<compile_context>
chip_gen: v7x
topology: tpu7x:2x2x1
jax: 0.10.0
libtpu: 0.0.40
codegen_flags: <defaults>
</compile_context>

<pallas_src>
import jax
import jax.numpy as jnp
from jax.experimental import pallas as pl
from jax.experimental.pallas import tpu as pltpu

STATE_DIM = 4      # CartPole observation dim
ACTION_DIM = 2     # CartPole action dim
HIDDEN = 256

IN_PAD = 128       # lane-aligned padded input-feature dim
OUT_PAD = 128      # lane-aligned padded output dim (keep >= 128: unmasked stores)
MAX_TILE_B = 128   # batch tile (sublane axis)


def _round_up(n, m):
    return ((n + m - 1) // m) * m


def dqn_kernel(x_ref, w1_ref, b1_ref, w2_ref, b2_ref, o_ref):
    # x:(TB, IN_PAD)  w1:(IN_PAD, HIDDEN)  b1:(1, HIDDEN)
    # w2:(HIDDEN, OUT_PAD)  b2:(1, OUT_PAD)  o:(TB, OUT_PAD)
    h = jnp.dot(x_ref[...], w1_ref[...], preferred_element_type=jnp.float32)
    h = jnp.maximum(h + b1_ref[...], 0.0)                 # bias + ReLU (f32, VPU)
    q = jnp.dot(h, w2_ref[...], preferred_element_type=jnp.float32)
    o_ref[...] = (q + b2_ref[...]).astype(o_ref.dtype)


def prepare_params(w1, b1, w2, b2):
    """Pad weights/biases to tile-aligned shapes ONCE; keep results resident on device.

    w1: (STATE_DIM, HIDDEN), b1: (HIDDEN,), w2: (HIDDEN, ACTION_DIM), b2: (ACTION_DIM,)
    """
    w1_p = jnp.zeros((IN_PAD, HIDDEN), jnp.float32).at[:STATE_DIM, :].set(
        w1.astype(jnp.float32))
    b1_p = b1.reshape(1, HIDDEN).astype(jnp.float32)
    w2_p = jnp.zeros((HIDDEN, OUT_PAD), jnp.float32).at[:, :ACTION_DIM].set(
        w2.astype(jnp.float32))
    b2_p = jnp.zeros((1, OUT_PAD), jnp.float32).at[0, :ACTION_DIM].set(
        b2.astype(jnp.float32))
    return w1_p, b1_p, w2_p, b2_p
    # TODO(synk): optionally store w1_p/w2_p as bfloat16 (f32 accumulation kept in-kernel)
    # once large replay batches make the second matmul the dominant cost.


@jax.jit
def dqn_forward(x, w1_p, b1_p, w2_p, b2_p):
    """x: (batch, STATE_DIM) f32. Returns (batch, ACTION_DIM) f32 Q-values."""
    batch = x.shape[0]
    tile_b = min(MAX_TILE_B, _round_up(batch, 8))
    b_pad = _round_up(batch, tile_b)

    # Single cheap pad op on the per-call critical path (weights already padded).
    x_p = jnp.pad(x.astype(jnp.float32),
                  ((0, b_pad - batch), (0, IN_PAD - STATE_DIM)))

    out_p = pl.pallas_call(
        dqn_kernel,
        out_shape=jax.ShapeDtypeStruct((b_pad, OUT_PAD), jnp.float32),
        grid=(b_pad // tile_b,),
        in_specs=[
            pl.BlockSpec((tile_b, IN_PAD), lambda i: (i, 0)),   # x: tiled over batch
            pl.BlockSpec((IN_PAD, HIDDEN), lambda i: (0, 0)),   # w1: resident
            pl.BlockSpec((1, HIDDEN), lambda i: (0, 0)),        # b1: resident
            pl.BlockSpec((HIDDEN, OUT_PAD), lambda i: (0, 0)),  # w2: resident
            pl.BlockSpec((1, OUT_PAD), lambda i: (0, 0)),       # b2: resident
        ],
        out_specs=pl.BlockSpec((tile_b, OUT_PAD), lambda i: (i, 0)),
        compiler_params=pltpu.CompilerParams(
            dimension_semantics=("parallel",)),                 # shard batch across TCs (v7x)
    )(x_p, w1_p, b1_p, w2_p, b2_p)

    return out_p[:batch, :ACTION_DIM]


def init_params(key):
    """Deterministic init mimicking PyTorch nn.Linear default (U(-1/sqrt(fan_in), +))."""
    k1, k2, k3, k4 = jax.random.split(key, 4)
    bound1 = 1.0 / jnp.sqrt(STATE_DIM)
    bound2 = 1.0 / jnp.sqrt(HIDDEN)
    w1 = jax.random.uniform(k1, (STATE_DIM, HIDDEN), jnp.float32, -bound1, bound1)
    b1 = jax.random.uniform(k2, (HIDDEN,), jnp.float32, -bound1, bound1)
    w2 = jax.random.uniform(k3, (HIDDEN, ACTION_DIM), jnp.float32, -bound2, bound2)
    b2 = jax.random.uniform(k4, (ACTION_DIM,), jnp.float32, -bound2, bound2)
    return w1, b1, w2, b2


if __name__ == "__main__":
    key = jax.random.PRNGKey(0)
    pkey, xkey, xkey2 = jax.random.split(key, 3)
    w1, b1, w2, b2 = init_params(pkey)

    # One-time param prep (padded copies stay on device).
    w1_p, b1_p, w2_p, b2_p = prepare_params(w1, b1, w2, b2)

    def ref_fn(x):
        return jnp.maximum(x @ w1 + b1, 0.0) @ w2 + b2

    # Small action-selection batch (per env step).
    batch = 2
    x = jax.random.normal(xkey, (batch, STATE_DIM), jnp.float32)
    q = dqn_forward(x, w1_p, b1_p, w2_p, b2_p)
    jax.block_until_ready(q)
    assert q.shape == (batch, ACTION_DIM)
    assert jnp.allclose(q, ref_fn(x), atol=1e-5, rtol=1e-5)

    # Replay-style batch exercising the multi-tile batch grid (grid > 1).
    batch2 = 200
    x2 = jax.random.normal(xkey2, (batch2, STATE_DIM), jnp.float32)
    q2 = dqn_forward(x2, w1_p, b1_p, w2_p, b2_p)
    jax.block_until_ready(q2)
    assert q2.shape == (batch2, ACTION_DIM)
    assert jnp.allclose(q2, ref_fn(x2), atol=1e-5, rtol=1e-5)

    print("KERNEL_OK")
</pallas_src>

<mosaic_0001>
module attributes {stable_mosaic.version = 11 : i64} {
  func.func @dqn_kernel(%arg0: i32, %arg1: memref<8x128xf32, #tpu.memory_space<vmem>>, %arg2: memref<128x256xf32, #tpu.memory_space<vmem>>, %arg3: memref<1x256xf32, #tpu.memory_space<vmem>>, %arg4: memref<256x128xf32, #tpu.memory_space<vmem>>, %arg5: memref<1x128xf32, #tpu.memory_space<vmem>>, %arg6: memref<8x128xf32, #tpu.memory_space<vmem>>) attributes {dimension_semantics = [#tpu.dimension_semantics<parallel>], iteration_bounds = array<i64: 1>, scalar_prefetch = 0 : i64, scratch_operands = 0 : i64, tpu.core_type = #tpu.core_type<tc>, window_params = [{transform_indices = @transform_0, window_bounds = array<i64: 8, 128>}, {pipeline_mode = #tpu.pipeline_mode<synchronous>, transform_indices = @transform_1, window_bounds = array<i64: 128, 256>}, {pipeline_mode = #tpu.pipeline_mode<synchronous>, transform_indices = @transform_2, window_bounds = array<i64: 1, 256>}, {pipeline_mode = #tpu.pipeline_mode<synchronous>, transform_indices = @transform_3, window_bounds = array<i64: 256, 128>}, {pipeline_mode = #tpu.pipeline_mode<synchronous>, transform_indices = @transform_4, window_bounds = array<i64: 1, 128>}, {transform_indices = @transform_5, window_bounds = array<i64: 8, 128>}]} {
    %c0 = arith.constant 0 : index
    %c0_0 = arith.constant 0 : index
    %0 = vector.load %arg1[%c0, %c0_0] : memref<8x128xf32, #tpu.memory_space<vmem>>, vector<8x128xf32>
    %c0_1 = arith.constant 0 : index
    %c0_2 = arith.constant 0 : index
    %1 = vector.load %arg2[%c0_1, %c0_2] : memref<128x256xf32, #tpu.memory_space<vmem>>, vector<128x256xf32>
    %cst = arith.constant dense<0.000000e+00> : vector<8x256xf32>
    %2 = tpu.matmul %0, %1, %cst {dimension_numbers = #tpu.dot_dimension_numbers<[1], [0], [0], [1], [0, 0, 1, 1], [], []>} : vector<8x128xf32>, vector<128x256xf32>, vector<8x256xf32> -> vector<8x256xf32>
    %c0_3 = arith.constant 0 : index
    %c0_4 = arith.constant 0 : index
    %3 = vector.load %arg3[%c0_3, %c0_4] : memref<1x256xf32, #tpu.memory_space<vmem>>, vector<1x256xf32>
    %4 = vector.broadcast %3 : vector<1x256xf32> to vector<8x256xf32>
    %5 = arith.addf %2, %4 : vector<8x256xf32>
    %cst_5 = arith.constant 0.000000e+00 : f32
    %6 = vector.broadcast %cst_5 : f32 to vector<8x256xf32>
    %7 = arith.maximumf %5, %6 : vector<8x256xf32>
    %c0_6 = arith.constant 0 : index
    %c0_7 = arith.constant 0 : index
    %8 = vector.load %arg4[%c0_6, %c0_7] : memref<256x128xf32, #tpu.memory_space<vmem>>, vector<256x128xf32>
    %cst_8 = arith.constant dense<0.000000e+00> : vector<8x128xf32>
    %9 = tpu.matmul %7, %8, %cst_8 {dimension_numbers = #tpu.dot_dimension_numbers<[1], [0], [0], [1], [0, 0, 1, 1], [], []>} : vector<8x256xf32>, vector<256x128xf32>, vector<8x128xf32> -> vector<8x128xf32>
    %c0_9 = arith.constant 0 : index
    %c0_10 = arith.constant 0 : index
    %10 = vector.load %arg5[%c0_9, %c0_10] : memref<1x128xf32, #tpu.memory_space<vmem>>, vector<1x128xf32>
    %11 = vector.broadcast %10 : vector<1x128xf32> to vector<8x128xf32>
    %12 = arith.addf %9, %11 : vector<8x128xf32>
    %c0_11 = arith.constant 0 : index
    %c0_12 = arith.constant 0 : index
    %13 = vector.load %arg6[%c0_11, %c0_12] : memref<8x128xf32, #tpu.memory_space<vmem>>, vector<8x128xf32>
    tpu.vector_store %arg6[%c0_11, %c0_12], %12 {strides = array<i32>} : memref<8x128xf32, #tpu.memory_space<vmem>>, vector<8x128xf32>,
    return
  }
  func.func @transform_0(%arg0: i32) -> (i32, i32) {
    %c0_i32 = arith.constant 0 : i32
    %c0_i32_0 = arith.constant 0 : i32
    return %arg0, %c0_i32 : i32, i32
  }
  func.func @transform_1(%arg0: i32) -> (i32, i32) {
    %c0_i32 = arith.constant 0 : i32
    %c0_i32_0 = arith.constant 0 : i32
    %c0_i32_1 = arith.constant 0 : i32
    return %c0_i32, %c0_i32_0 : i32, i32
  }
  func.func @transform_2(%arg0: i32) -> (i32, i32) {
    %c0_i32 = arith.constant 0 : i32
    %c0_i32_0 = arith.constant 0 : i32
    %c0_i32_1 = arith.constant 0 : i32
    return %c0_i32, %c0_i32_0 : i32, i32
  }
  func.func @transform_3(%arg0: i32) -> (i32, i32) {
    %c0_i32 = arith.constant 0 : i32
    %c0_i32_0 = arith.constant 0 : i32
    %c0_i32_1 = arith.constant 0 : i32
    return %c0_i32, %c0_i32_0 : i32, i32
  }
  func.func @transform_4(%arg0: i32) -> (i32, i32) {
    %c0_i32 = arith.constant 0 : i32
    %c0_i32_0 = arith.constant 0 : i32
    %c0_i32_1 = arith.constant 0 : i32
    return %c0_i32, %c0_i32_0 : i32, i32
  }
  func.func @transform_5(%arg0: i32) -> (i32, i32) {
    %c0_i32 = arith.constant 0 : i32
    %c0_i32_0 = arith.constant 0 : i32
    return %arg0, %c0_i32 : i32, i32
  }
}

</mosaic_0001>

<llo_original>
// kernel: dqn_forward.1
$region0: #{dqn_forward.1}
  #allocation0 [shape = 'u32[]', space=smem, size = 0x4, offset = 0x4, fixed_abs, tag = 'smem constant byte address 0x4 - core index']
  #allocation1 [shape = 'u32[144,128]{1,0:T(1,128)}', space=vmem, size = 0x12000, scoped, tag = 'internal scratch']
  %s0 = inlined_call_operand.vmem [shape: f32[8,128], index: 0, kind: input, shape index: {}]
  %s1 = inlined_call_operand.hbm [shape: f32[128,256], index: 1, kind: input, shape index: {}]
  %s2 = inlined_call_operand.vmem [shape: f32[1,256], index: 2, kind: input, shape index: {}]
  %s3 = inlined_call_operand.hbm [shape: f32[256,128], index: 3, kind: input, shape index: {}]
  %s4 = inlined_call_operand.vmem [shape: f32[1,128], index: 4, kind: input, shape index: {}]
  %s5 = inlined_call_operand.vmem [shape: f32[8,128], index: 5, kind: output, shape index: {}]
  %s6 = sld [smem:[#allocation0]]
  $region38: #{dqn_forward.1} parent=0
    _
  %s8 = ssub.s32 1, %s6
  %s9 = scalar_select 0, %s8, %s6
  $region1: #{dqn_forward.1} parent=0
    #allocation2 [shape = 'u8[131072]{0}', space=vmem, size = 0x20000, scoped, tag = 'input window, operand 1, single buffered']
    #allocation3 [shape = 's32[1]{0}', space=sflag, size = 0x4, scoped, tag = 'scoped memory for dqn_forward.1']
    #allocation4 [shape = 'u8[131072]{0}', space=vmem, size = 0x20000, scoped, tag = 'input window, operand 3, single buffered']
    #allocation5 [shape = 's32[1]{0}', space=sflag, size = 0x4, scoped, tag = 'scoped memory for dqn_forward.1']
    %10 = vsyncpa [#allocation3], 0
    %11 = vsyncpa [#allocation5], 0
    // Predicated region
    $region2: #{dqn_forward.1} parent=1 // pred_check
      _
    $region3: #{dqn_forward.1} parent=1 // pred_check_branch
      %13 = sbr.rel (0) target = $region5
    $region4: #{dqn_forward.1} parent=1 // pred_region
      _
    $region5: #{dqn_forward.1} parent=1 // pred_fallthru
      _
    // Predicated region
    $region6: #{dqn_forward.1} parent=1 // pred_check
      _
    $region7: #{dqn_forward.1} parent=1 // pred_check_branch
      %15 = sbr.rel (0) target = $region9
    $region8: #{dqn_forward.1} parent=1 // pred_region
      %s17 = ssub.s32 4096, 4096
      %18 = vsyncadd [#allocation3], %s17
      %s19 = sshll.u32 [#allocation2], 4
      %s20 = int_to_ptr.vmem [resolvable:$true] %s19
      %25 = dma.hbm_to_vmem [thread:$0]  %s1, 4096, %s20, [#allocation3], 256, 256, 16
    $region9: #{dqn_forward.1} parent=1 // pred_fallthru
      _
    // Predicated region
    $region10: #{dqn_forward.1} parent=1 // pred_check
      _
    $region11: #{dqn_forward.1} parent=1 // pred_check_branch
      %27 = sbr.rel (0) target = $region13
    $region12: #{dqn_forward.1} parent=1 // pred_region
      _
    $region13: #{dqn_forward.1} parent=1 // pred_fallthru
      _
    // Predicated region
    $region14: #{dqn_forward.1} parent=1 // pred_check
      _
    $region15: #{dqn_forward.1} parent=1 // pred_check_branch
      %29 = sbr.rel (0) target = $region17
    $region16: #{dqn_forward.1} parent=1 // pred_region
      %s31 = ssub.s32 4096, 4096
      %32 = vsyncadd [#allocation5], %s31
      %s33 = sshll.u32 [#allocation4], 4
      %s34 = int_to_ptr.vmem [resolvable:$true] %s33
      %39 = dma.hbm_to_vmem [thread:$0]  %s3, 4096, %s34, [#allocation5], 128, 128, 8
    $region17: #{dqn_forward.1} parent=1 // pred_fallthru
      _
    // Predicated region
    $region18: #{dqn_forward.1} parent=1 // pred_check
      _
    $region19: #{dqn_forward.1} parent=1 // pred_check_branch
      %41 = sbr.rel (0) target = $region21
    $region20: #{dqn_forward.1} parent=1 // pred_region
      _
    $region21: #{dqn_forward.1} parent=1 // pred_fallthru
      _
    // Predicated region
    $region22: #{dqn_forward.1} parent=1 // pred_check
      _
    $region23: #{dqn_forward.1} parent=1 // pred_check_branch
      %43 = sbr.rel (0) target = $region25
    $region24: #{dqn_forward.1} parent=1 // pred_region
      %44 = dma.done [#allocation3], 4096
    $region25: #{dqn_forward.1} parent=1 // pred_fallthru
      _
    // Predicated region
    $region26: #{dqn_forward.1} parent=1 // pred_check
      _
    $region27: #{dqn_forward.1} parent=1 // pred_check_branch
      %46 = sbr.rel (0) target = $region29
    $region28: #{dqn_forward.1} parent=1 // pred_region
      %47 = dma.done [#allocation5], 4096
    $region29: #{dqn_forward.1} parent=1 // pred_fallthru
      _
    %v48 = vld [vmem:[%s0] sm:$0xff]
    %v49 = vld [vmem:[#allocation2] sm:$0xff]
    %v50 = vld [vmem:[#allocation2 + $0x8] sm:$0xff]
    %v51 = vld [vmem:[#allocation2 + $0x10] sm:$0xff]
    %v52 = vld [vmem:[#allocation2 + $0x18] sm:$0xff]
    %v53 = vld [vmem:[#allocation2 + $0x20] sm:$0xff]
    %v54 = vld [vmem:[#allocation2 + $0x28] sm:$0xff]
    %v55 = vld [vmem:[#allocation2 + $0x30] sm:$0xff]
    %v56 = vld [vmem:[#allocation2 + $0x38] sm:$0xff]
    %v57 = vld [vmem:[#allocation2 + $0x40] sm:$0xff]
    %v58 = vld [vmem:[#allocation2 + $0x48] sm:$0xff]
    %v59 = vld [vmem:[#allocation2 + $0x50] sm:$0xff]
    %v60 = vld [vmem:[#allocation2 + $0x58] sm:$0xff]
    %v61 = vld [vmem:[#allocation2 + $0x60] sm:$0xff]
    %v62 = vld [vmem:[#allocation2 + $0x68] sm:$0xff]
    %v63 = vld [vmem:[#allocation2 + $0x70] sm:$0xff]
    %v64 = vld [vmem:[#allocation2 + $0x78] sm:$0xff]
    %v65 = vld [vmem:[#allocation2 + $0x80] sm:$0xff]
    %v66 = vld [vmem:[#allocation2 + $0x88] sm:$0xff]
    %v67 = vld [vmem:[#allocation2 + $0x90] sm:$0xff]
    %v68 = vld [vmem:[#allocation2 + $0x98] sm:$0xff]
    %v69 = vld [vmem:[#allocation2 + $0xa0] sm:$0xff]
    %v70 = vld [vmem:[#allocation2 + $0xa8] sm:$0xff]
    %v71 = vld [vmem:[#allocation2 + $0xb0] sm:$0xff]
    %v72 = vld [vmem:[#allocation2 + $0xb8] sm:$0xff]
    %v73 = vld [vmem:[#allocation2 + $0xc0] sm:$0xff]
    %v74 = vld [vmem:[#allocation2 + $0xc8] sm:$0xff]
    %v75 = vld [vmem:[#allocation2 + $0xd0] sm:$0xff]
    %v76 = vld [vmem:[#allocation2 + $0xd8] sm:$0xff]
    %v77 = vld [vmem:[#allocation2 + $0xe0] sm:$0xff]
    %v78 = vld [vmem:[#allocation2 + $0xe8] sm:$0xff]
    %v79 = vld [vmem:[#allocation2 + $0xf0] sm:$0xff]
    %v80 = vld [vmem:[#allocation2 + $0xf8] sm:$0xff]
    %v81 = vld [vmem:[%s2] sm:$0x3]
    %v83 = vlaneseq
    %v84 = vshrl.u32 %v83, 7
    %v85 = vsub.s32 0, %v84
    %v86 = vrot.slane %v81, %v85
    %v87 = vlaneseq
    %v88 = vshrl.u32 %v87, 7
    %v89 = vsub.s32 1, %v88
    %v90 = vrot.slane %v81, %v89
    %93 = vmatprep.subr.mxu0 %v50
    %94 = vmatpush1.msra.mxu0 %v49
    %95 = vmatprep.subr.mxu0 %v52
    %96 = vmatpush1.msra.mxu0 %v51
    %97 = vmatprep.subr.mxu0 %v54
    %98 = vmatpush1.msra.mxu0 %v53
    %99 = vmatprep.subr.mxu0 %v56
    %100 = vmatpush1.msra.mxu0 %v55
    %101 = vmatprep.subr.mxu0 %v58
    %102 = vmatpush1.msra.mxu0 %v57
    %103 = vmatprep.subr.mxu0 %v60
    %104 = vmatpush1.msra.mxu0 %v59
    %105 = vmatprep.subr.mxu0 %v62
    %106 = vmatpush1.msra.mxu0 %v61
    %107 = vmatprep.subr.mxu0 %v64
    %108 = vmatpush1.msra.mxu0 %v63
    %109 = vmatprep.subr.mxu0 %v66
    %110 = vmatpush1.msra.mxu0 %v65
    %111 = vmatprep.subr.mxu0 %v68
    %112 = vmatpush1.msra.mxu0 %v67
    %113 = vmatprep.subr.mxu0 %v70
    %114 = vmatpush1.msra.mxu0 %v69
    %115 = vmatprep.subr.mxu0 %v72
    %116 = vmatpush1.msra.mxu0 %v71
    %117 = vmatprep.subr.mxu0 %v74
    %118 = vmatpush1.msra.mxu0 %v73
    %119 = vmatprep.subr.mxu0 %v76
    %120 = vmatpush1.msra.mxu0 %v75
    %121 = vmatprep.subr.mxu0 %v78
    %122 = vmatpush1.msra.mxu0 %v77
    %123 = vmatprep.subr.mxu0 %v80
    %124 = vmatpush1.msra.mxu0 %v79
    %125 = vmatprep.subr.mxu0 0.0
    %126 = vmatpush1.msra.mxu0 0.0
    %127 = vmatprep.subr.mxu0 0.0
    %128 = vmatpush1.msra.mxu0 0.0
    %129 = vmatprep.subr.mxu0 0.0
    %130 = vmatpush1.msra.mxu0 0.0
    %131 = vmatprep.subr.mxu0 0.0
    %132 = vmatpush1.msra.mxu0 0.0
    %133 = vmatprep.subr.mxu0 0.0
    %134 = vmatpush1.msra.mxu0 0.0
    %135 = vmatprep.subr.mxu0 0.0
    %136 = vmatpush1.msra.mxu0 0.0
    %137 = vmatprep.subr.mxu0 0.0
    %138 = vmatpush1.msra.mxu0 0.0
    %139 = vmatprep.subr.mxu0 0.0
    %140 = vmatpush1.msra.mxu0 0.0
    %141 = vmatprep.subr.mxu0 0.0
    %142 = vmatpush1.msra.mxu0 0.0
    %143 = vmatprep.subr.mxu0 0.0
    %144 = vmatpush1.msra.mxu0 0.0
    %145 = vmatprep.subr.mxu0 0.0
    %146 = vmatpush1.msra.mxu0 0.0
    %147 = vmatprep.subr.mxu0 0.0
    %148 = vmatpush1.msra.mxu0 0.0
    %149 = vmatprep.subr.mxu0 0.0
    %150 = vmatpush1.msra.mxu0 0.0
    %151 = vmatprep.subr.mxu0 0.0
    %152 = vmatpush1.msra.mxu0 0.0
    %153 = vmatprep.subr.mxu0 0.0
    %154 = vmatpush1.msra.mxu0 0.0
    %155 = vmatprep.subr.mxu0 0.0
    %156 = vmatpush1.msra.mxu0 0.0
    %157 = vmatprep.mubr.f32.mxu0 0.0
    %158 = vmatmul.mubr.f32.gmra.mrb[0].mxu0 %v48
    %v159 = vpop.f32.mrb[0].mxu0
    %v160 = vadd.f32 %v86, %v159
    %v161 = vpop.f32.mrb[0].mxu0
    %v162 = vadd.f32 %v90, %v161
    %163 = vdwg.mxu0
    %v164 = vmax.f32 %v160, 0.0
    %v165 = vmax.f32 %v162, 0.0
    %v166 = vld [vmem:[#allocation4] sm:$0xff]
    %v167 = vld [vmem:[#allocation4 + $0x8] sm:$0xff]
    %v168 = vld [vmem:[#allocation4 + $0x10] sm:$0xff]
    %v169 = vld [vmem:[#allocation4 + $0x18] sm:$0xff]
    %v170 = vld [vmem:[#allocation4 + $0x20] sm:$0xff]
    %v171 = vld [vmem:[#allocation4 + $0x28] sm:$0xff]
    %v172 = vld [vmem:[#allocation4 + $0x30] sm:$0xff]
    %v173 = vld [vmem:[#allocation4 + $0x38] sm:$0xff]
    %v174 = vld [vmem:[#allocation4 + $0x40] sm:$0xff]
    %v175 = vld [vmem:[#allocation4 + $0x48] sm:$0xff]
    %v176 = vld [vmem:[#allocation4 + $0x50] sm:$0xff]
    %v177 = vld [vmem:[#allocation4 + $0x58] sm:$0xff]
    %v178 = vld [vmem:[#allocation4 + $0x60] sm:$0xff]
    %v179 = vld [vmem:[#allocation4 + $0x68] sm:$0xff]
    %v180 = vld [vmem:[#allocation4 + $0x70] sm:$0xff]
    %v181 = vld [vmem:[#allocation4 + $0x78] sm:$0xff]
    %v182 = vld [vmem:[#allocation4 + $0x80] sm:$0xff]
    %v183 = vld [vmem:[#allocation4 + $0x88] sm:$0xff]
    %v184 = vld [vmem:[#allocation4 + $0x90] sm:$0xff]
    %v185 = vld [vmem:[#allocation4 + $0x98] sm:$0xff]
    %v186 = vld [vmem:[#allocation4 + $0xa0] sm:$0xff]
    %v187 = vld [vmem:[#allocation4 + $0xa8] sm:$0xff]
    %v188 = vld [vmem:[#allocation4 + $0xb0] sm:$0xff]
    %v189 = vld [vmem:[#allocation4 + $0xb8] sm:$0xff]
    %v190 = vld [vmem:[#allocation4 + $0xc0] sm:$0xff]
    %v191 = vld [vmem:[#allocation4 + $0xc8] sm:$0xff]
    %v192 = vld [vmem:[#allocation4 + $0xd0] sm:$0xff]
    %v193 = vld [vmem:[#allocation4 + $0xd8] sm:$0xff]
    %v194 = vld [vmem:[#allocation4 + $0xe0] sm:$0xff]
    %v195 = vld [vmem:[#allocation4 + $0xe8] sm:$0xff]
    %v196 = vld [vmem:[#allocation4 + $0xf0] sm:$0xff]
    %v197 = vld [vmem:[#allocation4 + $0xf8] sm:$0xff]
    %v198 = vld [vmem:[%s4] sm:$0x1]
    %v200 = vlaneseq
    %v201 = vshrl.u32 %v200, 7
    %v202 = vsub.s32 0, %v201
    %v203 = vrot.slane %v198, %v202
    %205 = vmatprep.subr.mxu0 0.0
    %206 = vmatpush1.msra.mxu0 %v166
    %207 = vmatprep.subr.mxu0 0.0
    %208 = vmatpush1.msra.mxu0 %v167
    %209 = vmatprep.subr.mxu0 0.0
    %210 = vmatpush1.msra.mxu0 %v168
    %211 = vmatprep.subr.mxu0 0.0
    %212 = vmatpush1.msra.mxu0 %v169
    %213 = vmatprep.subr.mxu0 0.0
    %214 = vmatpush1.msra.mxu0 %v170
    %215 = vmatprep.subr.mxu0 0.0
    %216 = vmatpush1.msra.mxu0 %v171
    %217 = vmatprep.subr.mxu0 0.0
    %218 = vmatpush1.msra.mxu0 %v172
    %219 = vmatprep.subr.mxu0 0.0
    %220 = vmatpush1.msra.mxu0 %v173
    %221 = vmatprep.subr.mxu0 0.0
    %222 = vmatpush1.msra.mxu0 %v174
    %223 = vmatprep.subr.mxu0 0.0
    %224 = vmatpush1.msra.mxu0 %v175
    %225 = vmatprep.subr.mxu0 0.0
    %226 = vmatpush1.msra.mxu0 %v176
    %227 = vmatprep.subr.mxu0 0.0
    %228 = vmatpush1.msra.mxu0 %v177
    %229 = vmatprep.subr.mxu0 0.0
    %230 = vmatpush1.msra.mxu0 %v178
    %231 = vmatprep.subr.mxu0 0.0
    %232 = vmatpush1.msra.mxu0 %v179
    %233 = vmatprep.subr.mxu0 0.0
    %234 = vmatpush1.msra.mxu0 %v180
    %235 = vmatprep.subr.mxu0 0.0
    %236 = vmatpush1.msra.mxu0 %v181
    %237 = vmatprep.subr.mxu0 0.0
    %238 = vmatpush1.msra.mxu0 %v182
    %239 = vmatprep.subr.mxu0 0.0
    %240 = vmatpush1.msra.mxu0 %v183
    %241 = vmatprep.subr.mxu0 0.0
    %242 = vmatpush1.msra.mxu0 %v184
    %243 = vmatprep.subr.mxu0 0.0
    %244 = vmatpush1.msra.mxu0 %v185
    %245 = vmatprep.subr.mxu0 0.0
    %246 = vmatpush1.msra.mxu0 %v186
    %247 = vmatprep.subr.mxu0 0.0
    %248 = vmatpush1.msra.mxu0 %v187
    %249 = vmatprep.subr.mxu0 0.0
    %250 = vmatpush1.msra.mxu0 %v188
    %251 = vmatprep.subr.mxu0 0.0
    %252 = vmatpush1.msra.mxu0 %v189
    %253 = vmatprep.subr.mxu0 0.0
    %254 = vmatpush1.msra.mxu0 %v190
    %255 = vmatprep.subr.mxu0 0.0
    %256 = vmatpush1.msra.mxu0 %v191
    %257 = vmatprep.subr.mxu0 0.0
    %258 = vmatpush1.msra.mxu0 %v192
    %259 = vmatprep.subr.mxu0 0.0
    %260 = vmatpush1.msra.mxu0 %v193
    %261 = vmatprep.subr.mxu0 0.0
    %262 = vmatpush1.msra.mxu0 %v194
    %263 = vmatprep.subr.mxu0 0.0
    %264 = vmatpush1.msra.mxu0 %v195
    %265 = vmatprep.subr.mxu0 0.0
    %266 = vmatpush1.msra.mxu0 %v196
    %267 = vmatprep.subr.mxu0 0.0
    %268 = vmatpush1.msra.mxu0 %v197
    %269 = vmatprep.mubr.f32.mxu0 %v165
    %270 = vmatmul.mubr.f32.gmra.mrb[0].mxu0 %v164
    %v271 = vpop.f32.mrb[0].mxu0
    %v272 = vadd.f32 %v203, %v271
    %v273 = vpop.f32.mrb[0].mxu0
    %274 = vdwg.mxu0
    %275 = vst [vmem:[%s5] sm:$0xff] %v272
    // Predicated region
    $region30: #{dqn_forward.1} parent=1 // pred_check
      _
    $region31: #{dqn_forward.1} parent=1 // pred_check_branch
      %277 = sbr.rel (0) target = $region33
    $region32: #{dqn_forward.1} parent=1 // pred_region
      _
    $region33: #{dqn_forward.1} parent=1 // pred_fallthru
      _
    // Predicated region
    $region34: #{dqn_forward.1} parent=1 // pred_check
      _
    $region35: #{dqn_forward.1} parent=1 // pred_check_branch
      %279 = sbr.rel (0) target = $region37
    $region36: #{dqn_forward.1} parent=1 // pred_region
      _
    $region37: #{dqn_forward.1} parent=1 // pred_fallthru
      _
    %280 = vsyncpa [#allocation3], 1
    %281 = vsyncpa [#allocation5], 1

</llo_original>
